<compile_context>
chip_gen: v5e
topology: v5e:2x2
jax: 0.10.0
libtpu: 0.0.40
codegen_flags: <defaults>
</compile_context>

<pallas_src>
import jax
import jax.numpy as jnp
from jax.experimental import pallas as pl
from jax.experimental.pallas import tpu as pltpu

ROW_TARGET = 256  # B*N rows fed to the MXU per grid step (matches 2x256 MXU)


# ----------------------------------------------------------------------------
# Kernel 1: point-wise conv stack (conv2..conv5, BN folded) + per-batch max.
# Each grid step processes one group of G whole batch elements, i.e. a
# (G*N, 64) row tile, and writes the (G, emb) max-pooled features.
# ----------------------------------------------------------------------------
def point_stack_kernel(h_ref, w2, b2, w3, b3, w4, b4, w5, b5, feat_ref):
    G = feat_ref.shape[1]
    emb = feat_ref.shape[2]
    N = h_ref.shape[1] // G

    def layer(h, w, b):
        a = jnp.dot(h, w[...], preferred_element_type=jnp.float32) + b[...]
        return jnp.maximum(a, 0.0)

    h = h_ref[0]                                   # (G*N, 64) bf16
    h = layer(h, w2, b2).astype(jnp.bfloat16)      # conv2 + bn2 + relu
    h = layer(h, w3, b3).astype(jnp.bfloat16)      # conv3 + bn3 + relu
    h = layer(h, w4, b4).astype(jnp.bfloat16)      # conv4 + bn4 + relu
    h = layer(h, w5, b5)                           # conv5 + bn5 + relu (f32)
    # global max-pool over the points axis, segmented per batch element
    feat_ref[0] = jnp.max(h.reshape(G, N, emb), axis=1)


# ----------------------------------------------------------------------------
# Kernel 2: head MLP, batched over all B feature rows (weights read once).
# ----------------------------------------------------------------------------
def head_kernel(feat_ref, w6, b6, w7, b7, w8, b8, out_ref):
    def layer(h, w, b):
        a = jnp.dot(h, w[...], preferred_element_type=jnp.float32) + b[...]
        return jnp.maximum(a, 0.0)

    g = layer(feat_ref[...].astype(jnp.bfloat16), w6, b6)   # mlp1 + bn6 + relu
    g = layer(g.astype(jnp.bfloat16), w7, b7)               # mlp2 + bn7 + relu
    # dropout(p=0.3): identity in eval mode
    out_ref[...] = (jnp.dot(g.astype(jnp.bfloat16), w8[...],
                            preferred_element_type=jnp.float32) + b8[...])


# ----------------------------------------------------------------------------
# Wrapper
# ----------------------------------------------------------------------------
def pointnet_forward(x, params):
    """x: (B, N, 3) f32. params: flat [w1, b1, ..., w8, b8] (f32, BN folded).
    Returns (logits (B, out_channels) f32, feat (B, emb_dims) f32)."""
    B, N, _ = x.shape
    # bf16 weights, f32 biases (biases add into the f32 accumulator)
    wb = [a.astype(jnp.bfloat16) if i % 2 == 0 else a.astype(jnp.float32)
          for i, a in enumerate(params)]
    c1 = wb[0].shape[1]        # 64
    emb = wb[8].shape[1]       # w5: (128, emb)
    out_c = wb[14].shape[1]    # w8: (256, out_channels)

    # --- stage 0 (plain XLA): lane-sparse conv1 (K=3) -> (B*N, 64) bf16 ------
    x2d = x.reshape(B * N, 3).astype(jnp.bfloat16)
    h1 = jnp.maximum(
        jnp.dot(x2d, wb[0], preferred_element_type=jnp.float32) + wb[1], 0.0
    ).astype(jnp.bfloat16)

    # --- group whole batch elements so each grid step sees ~ROW_TARGET rows --
    G = max(1, min(B, ROW_TARGET // max(N, 1)))
    num_groups = -(-B // G)          # cdiv
    B_pad = num_groups * G
    if B_pad != B:                   # pad with dummy batch elements (sliced off)
        h1 = jnp.concatenate(
            [h1, jnp.zeros(((B_pad - B) * N, c1), h1.dtype)], axis=0)
    h1 = h1.reshape(num_groups, G * N, c1)

    # --- stage 1 (Pallas): conv2..conv5 + per-batch max-pool -----------------
    feat3 = pl.pallas_call(
        point_stack_kernel,
        grid=(num_groups,),
        in_specs=[pl.BlockSpec((1, G * N, c1), lambda i: (i, 0, 0))]
                + [pl.BlockSpec(a.shape, lambda i: (0, 0)) for a in wb[2:10]],
        out_specs=pl.BlockSpec((1, G, emb), lambda i: (i, 0, 0)),
        out_shape=jax.ShapeDtypeStruct((num_groups, G, emb), jnp.float32),
        compiler_params=pltpu.CompilerParams(
            dimension_semantics=("parallel",)),
    )(h1, *wb[2:10])
    feat = feat3.reshape(B_pad, emb)[:B]

    # --- stage 2 (Pallas): head MLP batched over all B -----------------------
    logits = pl.pallas_call(
        head_kernel,
        out_shape=jax.ShapeDtypeStruct((B, out_c), jnp.float32),
    )(feat, *wb[10:16])
    return logits, feat


# ----------------------------------------------------------------------------
# Deterministic parameter construction (synthetic, BN folded into weights)
# ----------------------------------------------------------------------------
def fold_bn(W, b, gamma, beta, mean, var, eps=1e-5):
    """W: (Cin, Cout), b: (Cout,). Returns BN-folded (Weff, beff (1, Cout))."""
    s = gamma / jnp.sqrt(var + eps)
    return W * s[None, :], ((b - mean) * s + beta).reshape(1, -1)


def make_params(key, emb_dims=256, output_channels=40):
    dims = [(3, 64), (64, 64), (64, 64), (64, 128), (128, emb_dims),
            (emb_dims, 512), (512, 256), (256, output_channels)]
    has_bn = [True, True, True, True, True, True, True, False]
    params = []
    for (cin, cout), bn in zip(dims, has_bn):
        key, kw, kb, kg, kbeta = jax.random.split(key, 5)
        W = jax.random.normal(kw, (cin, cout), jnp.float32) / jnp.sqrt(cin)
        b = 0.1 * jax.random.normal(kb, (cout,), jnp.float32)
        if bn:
            gamma = 1.0 + 0.1 * jax.random.normal(kg, (cout,), jnp.float32)
            beta = 0.1 * jax.random.normal(kbeta, (cout,), jnp.float32)
            mean = jnp.zeros((cout,), jnp.float32)   # eval-mode running stats
            var = jnp.ones((cout,), jnp.float32)
            Weff, beff = fold_bn(W, b, gamma, beta, mean, var)
        else:
            Weff, beff = W, b.reshape(1, -1)
        params += [Weff, beff]
    return params  # 16 arrays: [w1, b1, ..., w8, b8]


def pointnet_reference(x, params):
    """Pure-JAX reference with the same bf16 weight/activation quantization."""
    wb = [a.astype(jnp.bfloat16) if i % 2 == 0 else a.astype(jnp.float32)
          for i, a in enumerate(params)]
    B, N, _ = x.shape
    emb = wb[8].shape[1]

    def layer(h, w, b):
        return jnp.maximum(
            jnp.dot(h, w, preferred_element_type=jnp.float32) + b, 0.0)

    h = x.reshape(B * N, 3).astype(jnp.bfloat16)
    h = layer(h, wb[0], wb[1]).astype(jnp.bfloat16)
    h = layer(h, wb[2], wb[3]).astype(jnp.bfloat16)
    h = layer(h, wb[4], wb[5]).astype(jnp.bfloat16)
    h = layer(h, wb[6], wb[7]).astype(jnp.bfloat16)
    h = layer(h, wb[8], wb[9])                        # f32
    feat = jnp.max(h.reshape(B, N, emb), axis=1)
    g = layer(feat.astype(jnp.bfloat16), wb[10], wb[11])
    g = layer(g.astype(jnp.bfloat16), wb[12], wb[13])
    logits = jnp.dot(g.astype(jnp.bfloat16), wb[14],
                     preferred_element_type=jnp.float32) + wb[15]
    return logits, feat


if __name__ == "__main__":
    key = jax.random.PRNGKey(0)
    k_params, k_x = jax.random.split(key)

    B, N = 2, 16
    EMB, OUT = 256, 40

    params = make_params(k_params, emb_dims=EMB, output_channels=OUT)
    x = jax.random.normal(k_x, (B, N, 3), jnp.float32)   # (batch, points, xyz)

    logits, feat = pointnet_forward(x, params)
    logits, feat = jax.block_until_ready((logits, feat))

    ref_logits, ref_feat = pointnet_reference(x, params)
    assert logits.shape == (B, OUT) and feat.shape == (B, EMB)
    assert jnp.allclose(logits, ref_logits, atol=2e-2, rtol=2e-2), \
        float(jnp.max(jnp.abs(logits - ref_logits)))
    assert jnp.allclose(feat, ref_feat, atol=2e-2, rtol=2e-2), \
        float(jnp.max(jnp.abs(feat - ref_feat)))

    print("KERNEL_OK")
</pallas_src>

<mosaic_0001>
module attributes {stable_mosaic.version = 11 : i64} {
  func.func @point_stack_kernel(%arg0: i32, %arg1: memref<1x32x64xbf16, #tpu.memory_space<vmem>>, %arg2: memref<64x64xbf16, #tpu.memory_space<vmem>>, %arg3: memref<1x64xf32, #tpu.memory_space<vmem>>, %arg4: memref<64x64xbf16, #tpu.memory_space<vmem>>, %arg5: memref<1x64xf32, #tpu.memory_space<vmem>>, %arg6: memref<64x128xbf16, #tpu.memory_space<vmem>>, %arg7: memref<1x128xf32, #tpu.memory_space<vmem>>, %arg8: memref<128x256xbf16, #tpu.memory_space<vmem>>, %arg9: memref<1x256xf32, #tpu.memory_space<vmem>>, %arg10: memref<1x2x256xf32, #tpu.memory_space<vmem>>) attributes {dimension_semantics = [#tpu.dimension_semantics<parallel>], iteration_bounds = array<i64: 1>, scalar_prefetch = 0 : i64, scratch_operands = 0 : i64, tpu.core_type = #tpu.core_type<tc>, window_params = [{transform_indices = @transform_0, window_bounds = array<i64: 1, 32, 64>}, {pipeline_mode = #tpu.pipeline_mode<synchronous>, transform_indices = @transform_1, window_bounds = array<i64: 64, 64>}, {pipeline_mode = #tpu.pipeline_mode<synchronous>, transform_indices = @transform_2, window_bounds = array<i64: 1, 64>}, {pipeline_mode = #tpu.pipeline_mode<synchronous>, transform_indices = @transform_3, window_bounds = array<i64: 64, 64>}, {pipeline_mode = #tpu.pipeline_mode<synchronous>, transform_indices = @transform_4, window_bounds = array<i64: 1, 64>}, {pipeline_mode = #tpu.pipeline_mode<synchronous>, transform_indices = @transform_5, window_bounds = array<i64: 64, 128>}, {pipeline_mode = #tpu.pipeline_mode<synchronous>, transform_indices = @transform_6, window_bounds = array<i64: 1, 128>}, {pipeline_mode = #tpu.pipeline_mode<synchronous>, transform_indices = @transform_7, window_bounds = array<i64: 128, 256>}, {pipeline_mode = #tpu.pipeline_mode<synchronous>, transform_indices = @transform_8, window_bounds = array<i64: 1, 256>}, {transform_indices = @transform_9, window_bounds = array<i64: 1, 2, 256>}]} {
    %c0 = arith.constant 0 : index
    %c0_0 = arith.constant 0 : index
    %c0_1 = arith.constant 0 : index
    %0 = vector.load %arg1[%c0, %c0_0, %c0_1] : memref<1x32x64xbf16, #tpu.memory_space<vmem>>, vector<1x32x64xbf16>
    %1 = vector.shape_cast %0 : vector<1x32x64xbf16> to vector<32x64xbf16>
    %c0_2 = arith.constant 0 : index
    %c0_3 = arith.constant 0 : index
    %2 = vector.load %arg2[%c0_2, %c0_3] : memref<64x64xbf16, #tpu.memory_space<vmem>>, vector<64x64xbf16>
    %cst = arith.constant dense<0.000000e+00> : vector<32x64xf32>
    %3 = tpu.matmul %1, %2, %cst {dimension_numbers = #tpu.dot_dimension_numbers<[1], [0], [0], [1], [0, 0, 1, 1], [], []>} : vector<32x64xbf16>, vector<64x64xbf16>, vector<32x64xf32> -> vector<32x64xf32>
    %c0_4 = arith.constant 0 : index
    %c0_5 = arith.constant 0 : index
    %4 = vector.load %arg3[%c0_4, %c0_5] : memref<1x64xf32, #tpu.memory_space<vmem>>, vector<1x64xf32>
    %5 = vector.broadcast %4 : vector<1x64xf32> to vector<32x64xf32>
    %6 = arith.addf %3, %5 : vector<32x64xf32>
    %cst_6 = arith.constant 0.000000e+00 : f32
    %7 = vector.broadcast %cst_6 : f32 to vector<32x64xf32>
    %8 = arith.maximumf %6, %7 : vector<32x64xf32>
    %9 = arith.truncf %8 : vector<32x64xf32> to vector<32x64xbf16>
    %c0_7 = arith.constant 0 : index
    %c0_8 = arith.constant 0 : index
    %10 = vector.load %arg4[%c0_7, %c0_8] : memref<64x64xbf16, #tpu.memory_space<vmem>>, vector<64x64xbf16>
    %cst_9 = arith.constant dense<0.000000e+00> : vector<32x64xf32>
    %11 = tpu.matmul %9, %10, %cst_9 {dimension_numbers = #tpu.dot_dimension_numbers<[1], [0], [0], [1], [0, 0, 1, 1], [], []>} : vector<32x64xbf16>, vector<64x64xbf16>, vector<32x64xf32> -> vector<32x64xf32>
    %c0_10 = arith.constant 0 : index
    %c0_11 = arith.constant 0 : index
    %12 = vector.load %arg5[%c0_10, %c0_11] : memref<1x64xf32, #tpu.memory_space<vmem>>, vector<1x64xf32>
    %13 = vector.broadcast %12 : vector<1x64xf32> to vector<32x64xf32>
    %14 = arith.addf %11, %13 : vector<32x64xf32>
    %cst_12 = arith.constant 0.000000e+00 : f32
    %15 = vector.broadcast %cst_12 : f32 to vector<32x64xf32>
    %16 = arith.maximumf %14, %15 : vector<32x64xf32>
    %17 = arith.truncf %16 : vector<32x64xf32> to vector<32x64xbf16>
    %c0_13 = arith.constant 0 : index
    %c0_14 = arith.constant 0 : index
    %18 = vector.load %arg6[%c0_13, %c0_14] : memref<64x128xbf16, #tpu.memory_space<vmem>>, vector<64x128xbf16>
    %cst_15 = arith.constant dense<0.000000e+00> : vector<32x128xf32>
    %19 = tpu.matmul %17, %18, %cst_15 {dimension_numbers = #tpu.dot_dimension_numbers<[1], [0], [0], [1], [0, 0, 1, 1], [], []>} : vector<32x64xbf16>, vector<64x128xbf16>, vector<32x128xf32> -> vector<32x128xf32>
    %c0_16 = arith.constant 0 : index
    %c0_17 = arith.constant 0 : index
    %20 = vector.load %arg7[%c0_16, %c0_17] : memref<1x128xf32, #tpu.memory_space<vmem>>, vector<1x128xf32>
    %21 = vector.broadcast %20 : vector<1x128xf32> to vector<32x128xf32>
    %22 = arith.addf %19, %21 : vector<32x128xf32>
    %cst_18 = arith.constant 0.000000e+00 : f32
    %23 = vector.broadcast %cst_18 : f32 to vector<32x128xf32>
    %24 = arith.maximumf %22, %23 : vector<32x128xf32>
    %25 = arith.truncf %24 : vector<32x128xf32> to vector<32x128xbf16>
    %c0_19 = arith.constant 0 : index
    %c0_20 = arith.constant 0 : index
    %26 = vector.load %arg8[%c0_19, %c0_20] : memref<128x256xbf16, #tpu.memory_space<vmem>>, vector<128x256xbf16>
    %cst_21 = arith.constant dense<0.000000e+00> : vector<32x256xf32>
    %27 = tpu.matmul %25, %26, %cst_21 {dimension_numbers = #tpu.dot_dimension_numbers<[1], [0], [0], [1], [0, 0, 1, 1], [], []>} : vector<32x128xbf16>, vector<128x256xbf16>, vector<32x256xf32> -> vector<32x256xf32>
    %c0_22 = arith.constant 0 : index
    %c0_23 = arith.constant 0 : index
    %28 = vector.load %arg9[%c0_22, %c0_23] : memref<1x256xf32, #tpu.memory_space<vmem>>, vector<1x256xf32>
    %29 = vector.broadcast %28 : vector<1x256xf32> to vector<32x256xf32>
    %30 = arith.addf %27, %29 : vector<32x256xf32>
    %cst_24 = arith.constant 0.000000e+00 : f32
    %31 = vector.broadcast %cst_24 : f32 to vector<32x256xf32>
    %32 = arith.maximumf %30, %31 : vector<32x256xf32>
    %33 = vector.shape_cast %32 : vector<32x256xf32> to vector<2x16x256xf32>
    %cst_25 = arith.constant dense<0xFF800000> : vector<2x256xf32>
    %34 = vector.multi_reduction <maximumf>, %33, %cst_25 [1] : vector<2x16x256xf32> to vector<2x256xf32>
    %c0_26 = arith.constant 0 : index
    %c0_27 = arith.constant 0 : index
    %c0_28 = arith.constant 0 : index
    %35 = vector.load %arg10[%c0_26, %c0_27, %c0_28] : memref<1x2x256xf32, #tpu.memory_space<vmem>>, vector<1x2x256xf32>
    %36 = vector.shape_cast %35 : vector<1x2x256xf32> to vector<2x256xf32>
    %37 = vector.shape_cast %34 : vector<2x256xf32> to vector<1x2x256xf32>
    tpu.vector_store %arg10[%c0_26, %c0_27, %c0_28], %37 {strides = array<i32>} : memref<1x2x256xf32, #tpu.memory_space<vmem>>, vector<1x2x256xf32>,
    return
  }
  func.func @transform_0(%arg0: i32) -> (i32, i32, i32) {
    %c0_i32 = arith.constant 0 : i32
    %c0_i32_0 = arith.constant 0 : i32
    %c0_i32_1 = arith.constant 0 : i32
    return %arg0, %c0_i32, %c0_i32_0 : i32, i32, i32
  }
  func.func @transform_1(%arg0: i32) -> (i32, i32) {
    %c0_i32 = arith.constant 0 : i32
    %c0_i32_0 = arith.constant 0 : i32
    %c0_i32_1 = arith.constant 0 : i32
    return %c0_i32, %c0_i32_0 : i32, i32
  }
  func.func @transform_2(%arg0: i32) -> (i32, i32) {
    %c0_i32 = arith.constant 0 : i32
    %c0_i32_0 = arith.constant 0 : i32
    %c0_i32_1 = arith.constant 0 : i32
    return %c0_i32, %c0_i32_0 : i32, i32
  }
  func.func @transform_3(%arg0: i32) -> (i32, i32) {
    %c0_i32 = arith.constant 0 : i32
    %c0_i32_0 = arith.constant 0 : i32
    %c0_i32_1 = arith.constant 0 : i32
    return %c0_i32, %c0_i32_0 : i32, i32
  }
  func.func @transform_4(%arg0: i32) -> (i32, i32) {
    %c0_i32 = arith.constant 0 : i32
    %c0_i32_0 = arith.constant 0 : i32
    %c0_i32_1 = arith.constant 0 : i32
    return %c0_i32, %c0_i32_0 : i32, i32
  }
  func.func @transform_5(%arg0: i32) -> (i32, i32) {
    %c0_i32 = arith.constant 0 : i32
    %c0_i32_0 = arith.constant 0 : i32
    %c0_i32_1 = arith.constant 0 : i32
    return %c0_i32, %c0_i32_0 : i32, i32
  }
  func.func @transform_6(%arg0: i32) -> (i32, i32) {
    %c0_i32 = arith.constant 0 : i32
    %c0_i32_0 = arith.constant 0 : i32
    %c0_i32_1 = arith.constant 0 : i32
    return %c0_i32, %c0_i32_0 : i32, i32
  }
  func.func @transform_7(%arg0: i32) -> (i32, i32) {
    %c0_i32 = arith.constant 0 : i32
    %c0_i32_0 = arith.constant 0 : i32
    %c0_i32_1 = arith.constant 0 : i32
    return %c0_i32, %c0_i32_0 : i32, i32
  }
  func.func @transform_8(%arg0: i32) -> (i32, i32) {
    %c0_i32 = arith.constant 0 : i32
    %c0_i32_0 = arith.constant 0 : i32
    %c0_i32_1 = arith.constant 0 : i32
    return %c0_i32, %c0_i32_0 : i32, i32
  }
  func.func @transform_9(%arg0: i32) -> (i32, i32, i32) {
    %c0_i32 = arith.constant 0 : i32
    %c0_i32_0 = arith.constant 0 : i32
    %c0_i32_1 = arith.constant 0 : i32
    return %arg0, %c0_i32, %c0_i32_0 : i32, i32, i32
  }
}

</mosaic_0001>

<llo_original>
// kernel: tpu_custom_call.1
$region0: #{tpu_custom_call.1}
  #allocation0 [shape = 'u32[]', space=smem, size = 0x4, offset = 0x4, fixed_abs, tag = 'smem constant byte address 0x4 - core index']
  #allocation1 [shape = 'u32[72,128]{1,0:T(1,128)}', space=vmem, size = 0x9000, scoped, tag = 'internal scratch']
  %s0 = inlined_call_operand.hbm [shape: bf16[1,32,64], index: 0, kind: input, shape index: {}]
  %s1 = inlined_call_operand.hbm [shape: bf16[64,64], index: 1, kind: input, shape index: {}]
  %s2 = inlined_call_operand.vmem [shape: f32[1,64], index: 2, kind: input, shape index: {}]
  %s3 = inlined_call_operand.hbm [shape: bf16[64,64], index: 3, kind: input, shape index: {}]
  %s4 = inlined_call_operand.hbm [shape: f32[1,64], index: 4, kind: input, shape index: {}]
  %s5 = inlined_call_operand.hbm [shape: bf16[64,128], index: 5, kind: input, shape index: {}]
  %s6 = inlined_call_operand.vmem [shape: f32[1,128], index: 6, kind: input, shape index: {}]
  %s7 = inlined_call_operand.hbm [shape: bf16[128,256], index: 7, kind: input, shape index: {}]
  %s8 = inlined_call_operand.vmem [shape: f32[1,256], index: 8, kind: input, shape index: {}]
  %s9 = inlined_call_operand.hbm [shape: f32[1,2,256], index: 9, kind: output, shape index: {}]
  %s10 = sld [smem:[#allocation0]]
  $region70: #{tpu_custom_call.1} parent=0
    _
  %s12 = ssub.s32 1, %s10
  %s13 = scalar_select 0, %s12, %s10
  $region1: #{tpu_custom_call.1} parent=0
    #allocation2 [shape = 'u8[8192]{0}', space=vmem, size = 0x2000, scoped, tag = 'input window, operand 0, single buffered']
    #allocation3 [shape = 's32[1]{0}', space=sflag, size = 0x4, scoped, tag = 'scoped memory for tpu_custom_call.1']
    #allocation4 [shape = 's32[1]{0}', space=sflag, size = 0x4, scoped, tag = 'scoped memory for tpu_custom_call.1']
    #allocation5 [shape = 'u8[16384]{0}', space=vmem, size = 0x4000, scoped, tag = 'input window, operand 1, single buffered']
    #allocation6 [shape = 's32[1]{0}', space=sflag, size = 0x4, scoped, tag = 'scoped memory for tpu_custom_call.1']
    #allocation7 [shape = 'u8[16384]{0}', space=vmem, size = 0x4000, scoped, tag = 'input window, operand 3, single buffered']
    #allocation8 [shape = 'u8[512]{0}', space=vmem, size = 0x400, scoped, tag = 'input window, operand 4, single buffered']
    #allocation9 [shape = 's32[1]{0}', space=sflag, size = 0x4, scoped, tag = 'scoped memory for tpu_custom_call.1']
    #allocation10 [shape = 'u8[16384]{0}', space=vmem, size = 0x4000, scoped, tag = 'input window, operand 5, single buffered']
    #allocation11 [shape = 'u8[65536]{0}', space=vmem, size = 0x10000, scoped, tag = 'input window, operand 7, single buffered']
    #allocation12 [shape = 's32[1]{0}', space=sflag, size = 0x4, scoped, tag = 'scoped memory for tpu_custom_call.1']
    #allocation13 [shape = 'u8[2048]{0}', space=vmem, size = 0x800, scoped, tag = 'output window, operand 0, single buffered']
    %14 = vsyncpa [#allocation3], 0
    %15 = vsyncpa [#allocation6], 0
    %16 = vsyncpa [#allocation9], 0
    %17 = vsyncpa [#allocation12], 0
    %18 = vsyncpa [#allocation4], 0
    // Predicated region
    $region2: #{tpu_custom_call.1} parent=1 // pred_check
      _
    $region3: #{tpu_custom_call.1} parent=1 // pred_check_branch
      %20 = sbr.rel (0) target = $region5
    $region4: #{tpu_custom_call.1} parent=1 // pred_region
      %22 = vsyncadd [#allocation3], 0
      %s23 = sshll.u32 %s0, 4
      %s24 = int_to_ptr.hbm [resolvable:$true] %s23
      %s25 = sshll.u32 [#allocation2], 4
      %s26 = int_to_ptr.vmem [resolvable:$true] %s25
      %31 = dma.hbm_to_vmem [thread:$0]  %s24, 256, %s26, [#allocation3], 64, 64, 4
    $region5: #{tpu_custom_call.1} parent=1 // pred_fallthru
      _
    // Predicated region
    $region6: #{tpu_custom_call.1} parent=1 // pred_check
      _
    $region7: #{tpu_custom_call.1} parent=1 // pred_check_branch
      %33 = sbr.rel (0) target = $region9
    $region8: #{tpu_custom_call.1} parent=1 // pred_region
      %35 = vsyncadd [#allocation6], 0
      %s36 = sshll.u32 %s1, 4
      %s37 = int_to_ptr.hbm [resolvable:$true] %s36
      %s38 = sshll.u32 [#allocation5], 4
      %s39 = int_to_ptr.vmem [resolvable:$true] %s38
      %44 = dma.hbm_to_vmem [thread:$0]  %s37, 512, %s39, [#allocation6], 64, 64, 4
    $region9: #{tpu_custom_call.1} parent=1 // pred_fallthru
      _
    // Predicated region
    $region10: #{tpu_custom_call.1} parent=1 // pred_check
      _
    $region11: #{tpu_custom_call.1} parent=1 // pred_check_branch
      %46 = sbr.rel (0) target = $region13
    $region12: #{tpu_custom_call.1} parent=1 // pred_region
      _
    $region13: #{tpu_custom_call.1} parent=1 // pred_fallthru
      _
    // Predicated region
    $region14: #{tpu_custom_call.1} parent=1 // pred_check
      _
    $region15: #{tpu_custom_call.1} parent=1 // pred_check_branch
      %48 = sbr.rel (0) target = $region17
    $region16: #{tpu_custom_call.1} parent=1 // pred_region
      %50 = vsyncadd [#allocation6], 0
      %s51 = sshll.u32 %s3, 4
      %s52 = int_to_ptr.hbm [resolvable:$true] %s51
      %s53 = sshll.u32 [#allocation7], 4
      %s54 = int_to_ptr.vmem [resolvable:$true] %s53
      %59 = dma.hbm_to_vmem [thread:$0]  %s52, 512, %s54, [#allocation6], 64, 64, 4
    $region17: #{tpu_custom_call.1} parent=1 // pred_fallthru
      _
    // Predicated region
    $region18: #{tpu_custom_call.1} parent=1 // pred_check
      _
    $region19: #{tpu_custom_call.1} parent=1 // pred_check_branch
      %61 = sbr.rel (0) target = $region21
    $region20: #{tpu_custom_call.1} parent=1 // pred_region
      %63 = vsyncadd [#allocation9], 0
      %s65 = sshll.u32 %s4, 4
      %s66 = int_to_ptr.hbm [resolvable:$true] %s65
      %s67 = sshll.u32 [#allocation8], 4
      %s68 = int_to_ptr.vmem [resolvable:$true] %s67
      %70 = dma.hbm_to_vmem [thread:$0]  %s66, 16, %s68, [#allocation9]
    $region21: #{tpu_custom_call.1} parent=1 // pred_fallthru
      _
    // Predicated region
    $region22: #{tpu_custom_call.1} parent=1 // pred_check
      _
    $region23: #{tpu_custom_call.1} parent=1 // pred_check_branch
      %72 = sbr.rel (0) target = $region25
    $region24: #{tpu_custom_call.1} parent=1 // pred_region
      %74 = vsyncadd [#allocation9], 0
      %s75 = sshll.u32 %s5, 4
      %s76 = int_to_ptr.hbm [resolvable:$true] %s75
      %s77 = sshll.u32 [#allocation10], 4
      %s78 = int_to_ptr.vmem [resolvable:$true] %s77
      %83 = dma.hbm_to_vmem [thread:$0]  %s76, 512, %s78, [#allocation9], 64, 64, 4
    $region25: #{tpu_custom_call.1} parent=1 // pred_fallthru
      _
    // Predicated region
    $region26: #{tpu_custom_call.1} parent=1 // pred_check
      _
    $region27: #{tpu_custom_call.1} parent=1 // pred_check_branch
      %85 = sbr.rel (0) target = $region29
    $region28: #{tpu_custom_call.1} parent=1 // pred_region
      _
    $region29: #{tpu_custom_call.1} parent=1 // pred_fallthru
      _
    // Predicated region
    $region30: #{tpu_custom_call.1} parent=1 // pred_check
      _
    $region31: #{tpu_custom_call.1} parent=1 // pred_check_branch
      %87 = sbr.rel (0) target = $region33
    $region32: #{tpu_custom_call.1} parent=1 // pred_region
      %89 = vsyncadd [#allocation12], 0
      %s90 = sshll.u32 %s7, 4
      %s91 = int_to_ptr.hbm [resolvable:$true] %s90
      %s92 = sshll.u32 [#allocation11], 4
      %s93 = int_to_ptr.vmem [resolvable:$true] %s92
      %98 = dma.hbm_to_vmem [thread:$0]  %s91, 2048, %s93, [#allocation12], 128, 128, 8
    $region33: #{tpu_custom_call.1} parent=1 // pred_fallthru
      _
    // Predicated region
    $region34: #{tpu_custom_call.1} parent=1 // pred_check
      _
    $region35: #{tpu_custom_call.1} parent=1 // pred_check_branch
      %100 = sbr.rel (0) target = $region37
    $region36: #{tpu_custom_call.1} parent=1 // pred_region
      _
    $region37: #{tpu_custom_call.1} parent=1 // pred_fallthru
      _
    // Predicated region
    $region38: #{tpu_custom_call.1} parent=1 // pred_check
      _
    $region39: #{tpu_custom_call.1} parent=1 // pred_check_branch
      %102 = sbr.rel (0) target = $region41
    $region40: #{tpu_custom_call.1} parent=1 // pred_region
      %104 = dma.done [#allocation3], 256
    $region41: #{tpu_custom_call.1} parent=1 // pred_fallthru
      _
    // Predicated region
    $region42: #{tpu_custom_call.1} parent=1 // pred_check
      _
    $region43: #{tpu_custom_call.1} parent=1 // pred_check_branch
      %106 = sbr.rel (0) target = $region45
    $region44: #{tpu_custom_call.1} parent=1 // pred_region
      %108 = dma.done [#allocation6], 512
    $region45: #{tpu_custom_call.1} parent=1 // pred_fallthru
      _
    // Predicated region
    $region46: #{tpu_custom_call.1} parent=1 // pred_check
      _
    $region47: #{tpu_custom_call.1} parent=1 // pred_check_branch
      %110 = sbr.rel (0) target = $region49
    $region48: #{tpu_custom_call.1} parent=1 // pred_region
      %112 = dma.done [#allocation6], 512
    $region49: #{tpu_custom_call.1} parent=1 // pred_fallthru
      _
    // Predicated region
    $region50: #{tpu_custom_call.1} parent=1 // pred_check
      _
    $region51: #{tpu_custom_call.1} parent=1 // pred_check_branch
      %114 = sbr.rel (0) target = $region53
    $region52: #{tpu_custom_call.1} parent=1 // pred_region
      %116 = dma.done [#allocation9], 16
    $region53: #{tpu_custom_call.1} parent=1 // pred_fallthru
      _
    // Predicated region
    $region54: #{tpu_custom_call.1} parent=1 // pred_check
      _
    $region55: #{tpu_custom_call.1} parent=1 // pred_check_branch
      %118 = sbr.rel (0) target = $region57
    $region56: #{tpu_custom_call.1} parent=1 // pred_region
      %120 = dma.done [#allocation9], 512
    $region57: #{tpu_custom_call.1} parent=1 // pred_fallthru
      _
    // Predicated region
    $region58: #{tpu_custom_call.1} parent=1 // pred_check
      _
    $region59: #{tpu_custom_call.1} parent=1 // pred_check_branch
      %122 = sbr.rel (0) target = $region61
    $region60: #{tpu_custom_call.1} parent=1 // pred_region
      %124 = dma.done [#allocation12], 2048
    $region61: #{tpu_custom_call.1} parent=1 // pred_fallthru
      _
    %v126 = vld [vmem:[#allocation2] sm:$0xf]
    %v127 = vld [vmem:[#allocation2 + $0x4] sm:$0xf]
    %v128 = vld [vmem:[#allocation2 + $0x8] sm:$0xf]
    %v129 = vld [vmem:[#allocation2 + $0xc] sm:$0xf]
    %v130 = vld [vmem:[#allocation5] sm:$0xf]
    %v131 = vld [vmem:[#allocation5 + $0x4] sm:$0xf]
    %v132 = vld [vmem:[#allocation5 + $0x8] sm:$0xf]
    %v133 = vld [vmem:[#allocation5 + $0xc] sm:$0xf]
    %v134 = vld [vmem:[#allocation5 + $0x10] sm:$0xf]
    %v135 = vld [vmem:[#allocation5 + $0x14] sm:$0xf]
    %v136 = vld [vmem:[#allocation5 + $0x18] sm:$0xf]
    %v137 = vld [vmem:[#allocation5 + $0x1c] sm:$0xf]
    %v138 = vld [vmem:[%s2] sm:$0x1]
    %v140 = vperm.slane %v138, 0
    %v146 = vunpack.c.l.b16 %v126
    %v147 = vunpack.c.l.b16 %v127
    %v148 = vunpack.c.l.b16 %v128
    %v149 = vunpack.c.l.b16 %v129
    %v150 = vpack.c.b16 %v147, %v146
    %v151 = vpack.c.b16 %v149, %v148
    %v160 = vunpack.c.l.b16 %v130
    %v161 = vunpack.c.l.b16 %v131
    %v162 = vunpack.c.l.b16 %v132
    %v163 = vunpack.c.l.b16 %v133
    %v164 = vunpack.c.l.b16 %v134
    %v165 = vunpack.c.l.b16 %v135
    %v166 = vunpack.c.l.b16 %v136
    %v167 = vunpack.c.l.b16 %v137
    %v168 = vpack.c.b16 %v161, %v160
    %v169 = vpack.c.b16 %v163, %v162
    %v170 = vpack.c.b16 %v165, %v164
    %v171 = vpack.c.b16 %v167, %v166
    %vm176 = vcmask 523264
    %v178 = vsel %vm176, %v150, 0
    %v181 = vsel %vm176, %v151, 0
    %183 = vmatpush.bf16.msra.mxu0 0
    %184 = vmatpush.bf16.msra.mxu0 0
    %185 = vmatpush.bf16.msra.mxu0 0
    %186 = vmatpush.bf16.msra.mxu0 0
    %187 = vmatpush.bf16.msra.mxu0 %v171
    %188 = vmatpush.bf16.msra.mxu0 %v170
    %189 = vmatpush.bf16.msra.mxu0 %v169
    %190 = vmatpush.bf16.msra.mxu0 %v168
    %191 = vmatmul.bf16.gmra.mxu0 %v178
    %v192 = vpop.f32.mrf.mxu0
    %v193 = vadd.f32 %v140, %v192
    %v194 = vpop.f32.mrf.mxu0
    %v195 = vadd.f32 %v140, %v194
    %196 = vmatmul.bf16.gmra.mxu0 %v181
    %v197 = vpop.f32.mrf.mxu0
    %v198 = vadd.f32 %v140, %v197
    %v199 = vpop.f32.mrf.mxu0
    %v200 = vadd.f32 %v140, %v199
    %201 = vdwg.mxu0
    %v202 = vmax.f32 %v193, 0.0
    %v203 = vmax.f32 %v195, 0.0
    %v204 = vmax.f32 %v198, 0.0
    %v205 = vmax.f32 %v200, 0.0
    %v206 = vpack.c.bf16 %v203, %v202
    %v207 = vpack.c.bf16 %v205, %v204
    %v208 = vld [vmem:[#allocation7] sm:$0xf]
    %v209 = vld [vmem:[#allocation7 + $0x4] sm:$0xf]
    %v210 = vld [vmem:[#allocation7 + $0x8] sm:$0xf]
    %v211 = vld [vmem:[#allocation7 + $0xc] sm:$0xf]
    %v212 = vld [vmem:[#allocation7 + $0x10] sm:$0xf]
    %v213 = vld [vmem:[#allocation7 + $0x14] sm:$0xf]
    %v214 = vld [vmem:[#allocation7 + $0x18] sm:$0xf]
    %v215 = vld [vmem:[#allocation7 + $0x1c] sm:$0xf]
    %v216 = vld [vmem:[#allocation8] sm:$0x1]
    %v218 = vperm.slane %v216, 0
    %v228 = vunpack.c.l.b16 %v208
    %v229 = vunpack.c.l.b16 %v209
    %v230 = vunpack.c.l.b16 %v210
    %v231 = vunpack.c.l.b16 %v211
    %v232 = vunpack.c.l.b16 %v212
    %v233 = vunpack.c.l.b16 %v213
    %v234 = vunpack.c.l.b16 %v214
    %v235 = vunpack.c.l.b16 %v215
    %v236 = vpack.c.b16 %v229, %v228
    %v237 = vpack.c.b16 %v231, %v230
    %v238 = vpack.c.b16 %v233, %v232
    %v239 = vpack.c.b16 %v235, %v234
    %v245 = vsel %vm176, %v206, 0
    %v248 = vsel %vm176, %v207, 0
    %250 = vmatpush.bf16.msra.mxu0 0
    %251 = vmatpush.bf16.msra.mxu0 0
    %252 = vmatpush.bf16.msra.mxu0 0
    %253 = vmatpush.bf16.msra.mxu0 0
    %254 = vmatpush.bf16.msra.mxu0 %v239
    %255 = vmatpush.bf16.msra.mxu0 %v238
    %256 = vmatpush.bf16.msra.mxu0 %v237
    %257 = vmatpush.bf16.msra.mxu0 %v236
    %258 = vmatmul.bf16.gmra.mxu0 %v245
    %v259 = vpop.f32.mrf.mxu0
    %v260 = vadd.f32 %v218, %v259
    %v261 = vpop.f32.mrf.mxu0
    %v262 = vadd.f32 %v218, %v261
    %263 = vmatmul.bf16.gmra.mxu0 %v248
    %v264 = vpop.f32.mrf.mxu0
    %v265 = vadd.f32 %v218, %v264
    %v266 = vpop.f32.mrf.mxu0
    %v267 = vadd.f32 %v218, %v266
    %268 = vdwg.mxu0
    %v269 = vmax.f32 %v260, 0.0
    %v270 = vmax.f32 %v262, 0.0
    %v271 = vmax.f32 %v265, 0.0
    %v272 = vmax.f32 %v267, 0.0
    %v273 = vpack.c.bf16 %v270, %v269
    %v274 = vpack.c.bf16 %v272, %v271
    %v275 = vld [vmem:[#allocation10] sm:$0xf]
    %v276 = vld [vmem:[#allocation10 + $0x4] sm:$0xf]
    %v277 = vld [vmem:[#allocation10 + $0x8] sm:$0xf]
    %v278 = vld [vmem:[#allocation10 + $0xc] sm:$0xf]
    %v279 = vld [vmem:[#allocation10 + $0x10] sm:$0xf]
    %v280 = vld [vmem:[#allocation10 + $0x14] sm:$0xf]
    %v281 = vld [vmem:[#allocation10 + $0x18] sm:$0xf]
    %v282 = vld [vmem:[#allocation10 + $0x1c] sm:$0xf]
    %v283 = vld [vmem:[%s6] sm:$0x1]
    %v285 = vperm.slane %v283, 0
    %v295 = vunpack.c.l.b16 %v275
    %v296 = vunpack.c.l.b16 %v276
    %v297 = vunpack.c.l.b16 %v277
    %v298 = vunpack.c.l.b16 %v278
    %v299 = vunpack.c.l.b16 %v279
    %v300 = vunpack.c.l.b16 %v280
    %v301 = vunpack.c.l.b16 %v281
    %v302 = vunpack.c.l.b16 %v282
    %v303 = vpack.c.b16 %v296, %v295
    %v304 = vpack.c.b16 %v298, %v297
    %v305 = vpack.c.b16 %v300, %v299
    %v306 = vpack.c.b16 %v302, %v301
    %v312 = vsel %vm176, %v273, 0
    %v315 = vsel %vm176, %v274, 0
    %317 = vmatpush.bf16.msra.mxu0 0
    %318 = vmatpush.bf16.msra.mxu0 0
    %319 = vmatpush.bf16.msra.mxu0 0
    %320 = vmatpush.bf16.msra.mxu0 0
    %321 = vmatpush.bf16.msra.mxu0 %v306
    %322 = vmatpush.bf16.msra.mxu0 %v305
    %323 = vmatpush.bf16.msra.mxu0 %v304
    %324 = vmatpush.bf16.msra.mxu0 %v303
    %325 = vmatmul.bf16.gmra.mxu0 %v312
    %v326 = vpop.f32.mrf.mxu0
    %v327 = vadd.f32 %v285, %v326
    %v328 = vpop.f32.mrf.mxu0
    %v329 = vadd.f32 %v285, %v328
    %330 = vmatmul.bf16.gmra.mxu0 %v315
    %v331 = vpop.f32.mrf.mxu0
    %v332 = vadd.f32 %v285, %v331
    %v333 = vpop.f32.mrf.mxu0
    %v334 = vadd.f32 %v285, %v333
    %335 = vdwg.mxu0
    %v336 = vmax.f32 %v327, 0.0
    %v337 = vmax.f32 %v329, 0.0
    %v338 = vmax.f32 %v332, 0.0
    %v339 = vmax.f32 %v334, 0.0
    %v340 = vpack.c.bf16 %v337, %v336
    %v341 = vpack.c.bf16 %v339, %v338
    %v342 = vld [vmem:[#allocation11] sm:$0xff]
    %v343 = vld [vmem:[#allocation11 + $0x8] sm:$0xff]
    %v344 = vld [vmem:[#allocation11 + $0x10] sm:$0xff]
    %v345 = vld [vmem:[#allocation11 + $0x18] sm:$0xff]
    %v346 = vld [vmem:[#allocation11 + $0x20] sm:$0xff]
    %v347 = vld [vmem:[#allocation11 + $0x28] sm:$0xff]
    %v348 = vld [vmem:[#allocation11 + $0x30] sm:$0xff]
    %v349 = vld [vmem:[#allocation11 + $0x38] sm:$0xff]
    %v350 = vld [vmem:[#allocation11 + $0x40] sm:$0xff]
    %v351 = vld [vmem:[#allocation11 + $0x48] sm:$0xff]
    %v352 = vld [vmem:[#allocation11 + $0x50] sm:$0xff]
    %v353 = vld [vmem:[#allocation11 + $0x58] sm:$0xff]
    %v354 = vld [vmem:[#allocation11 + $0x60] sm:$0xff]
    %v355 = vld [vmem:[#allocation11 + $0x68] sm:$0xff]
    %v356 = vld [vmem:[#allocation11 + $0x70] sm:$0xff]
    %v357 = vld [vmem:[#allocation11 + $0x78] sm:$0xff]
    %v358 = vld [vmem:[%s8] sm:$0x3]
    %v360 = vperm.slane %v358, 0
    %v361 = vperm.slane %v358, 1
    %v380 = vunpack.c.l.b16 %v342
    %v381 = vunpack.c.h.b16 %v342
    %v382 = vunpack.c.l.b16 %v343
    %v383 = vunpack.c.h.b16 %v343
    %v384 = vunpack.c.l.b16 %v344
    %v385 = vunpack.c.h.b16 %v344
    %v386 = vunpack.c.l.b16 %v345
    %v387 = vunpack.c.h.b16 %v345
    %v388 = vunpack.c.l.b16 %v346
    %v389 = vunpack.c.h.b16 %v346
    %v390 = vunpack.c.l.b16 %v347
    %v391 = vunpack.c.h.b16 %v347
    %v392 = vunpack.c.l.b16 %v348
    %v393 = vunpack.c.h.b16 %v348
    %v394 = vunpack.c.l.b16 %v349
    %v395 = vunpack.c.h.b16 %v349
    %v396 = vunpack.c.l.b16 %v350
    %v397 = vunpack.c.h.b16 %v350
    %v398 = vunpack.c.l.b16 %v351
    %v399 = vunpack.c.h.b16 %v351
    %v400 = vunpack.c.l.b16 %v352
    %v401 = vunpack.c.h.b16 %v352
    %v402 = vunpack.c.l.b16 %v353
    %v403 = vunpack.c.h.b16 %v353
    %v404 = vunpack.c.l.b16 %v354
    %v405 = vunpack.c.h.b16 %v354
    %v406 = vunpack.c.l.b16 %v355
    %v407 = vunpack.c.h.b16 %v355
    %v408 = vunpack.c.l.b16 %v356
    %v409 = vunpack.c.h.b16 %v356
    %v410 = vunpack.c.l.b16 %v357
    %v411 = vunpack.c.h.b16 %v357
    %v412 = vpack.c.b16 %v382, %v380
    %v413 = vpack.c.b16 %v383, %v381
    %v414 = vpack.c.b16 %v386, %v384
    %v415 = vpack.c.b16 %v387, %v385
    %v416 = vpack.c.b16 %v390, %v388
    %v417 = vpack.c.b16 %v391, %v389
    %v418 = vpack.c.b16 %v394, %v392
    %v419 = vpack.c.b16 %v395, %v393
    %v420 = vpack.c.b16 %v398, %v396
    %v421 = vpack.c.b16 %v399, %v397
    %v422 = vpack.c.b16 %v402, %v400
    %v423 = vpack.c.b16 %v403, %v401
    %v424 = vpack.c.b16 %v406, %v404
    %v425 = vpack.c.b16 %v407, %v405
    %v426 = vpack.c.b16 %v410, %v408
    %v427 = vpack.c.b16 %v411, %v409
    %444 = vmatpush.bf16.msra.mxu0 %v426
    %445 = vmatpush.bf16.msra.mxu0 %v424
    %446 = vmatpush.bf16.msra.mxu0 %v422
    %447 = vmatpush.bf16.msra.mxu0 %v420
    %448 = vmatpush.bf16.msra.mxu0 %v418
    %449 = vmatpush.bf16.msra.mxu0 %v416
    %450 = vmatpush.bf16.msra.mxu0 %v414
    %451 = vmatpush.bf16.msra.mxu0 %v412
    %452 = vmatmul.bf16.gmra.mxu0 %v340
    %v453 = vpop.f32.mrf.mxu0
    %v454 = vadd.f32 %v360, %v453
    %v455 = vpop.f32.mrf.mxu0
    %v456 = vadd.f32 %v360, %v455
    %457 = vmatmul.bf16.gmra.mxu0 %v341
    %v458 = vpop.f32.mrf.mxu0
    %v459 = vadd.f32 %v360, %v458
    %v460 = vpop.f32.mrf.mxu0
    %v461 = vadd.f32 %v360, %v460
    %462 = vdwg.mxu0
    %463 = vmatpush.bf16.msra.mxu0 %v427
    %464 = vmatpush.bf16.msra.mxu0 %v425
    %465 = vmatpush.bf16.msra.mxu0 %v423
    %466 = vmatpush.bf16.msra.mxu0 %v421
    %467 = vmatpush.bf16.msra.mxu0 %v419
    %468 = vmatpush.bf16.msra.mxu0 %v417
    %469 = vmatpush.bf16.msra.mxu0 %v415
    %470 = vmatpush.bf16.msra.mxu0 %v413
    %471 = vmatmul.bf16.gmra.mxu0 %v340
    %v472 = vpop.f32.mrf.mxu0
    %v473 = vadd.f32 %v361, %v472
    %v474 = vpop.f32.mrf.mxu0
    %v475 = vadd.f32 %v361, %v474
    %476 = vmatmul.bf16.gmra.mxu0 %v341
    %v477 = vpop.f32.mrf.mxu0
    %v478 = vadd.f32 %v361, %v477
    %v479 = vpop.f32.mrf.mxu0
    %v480 = vadd.f32 %v361, %v479
    %481 = vdwg.mxu0
    %v482 = vmax.f32 %v454, 0.0
    %v483 = vmax.f32 %v473, 0.0
    %v484 = vmax.f32 %v456, 0.0
    %v485 = vmax.f32 %v475, 0.0
    %v486 = vmax.f32 %v459, 0.0
    %v487 = vmax.f32 %v478, 0.0
    %v488 = vmax.f32 %v461, 0.0
    %v489 = vmax.f32 %v480, 0.0
    %v490 = vmax.f32 %v482, %v484
    %v491 = vrot.slane %v490, 4
    %v492 = vmax.f32 %v490, %v491
    %v493 = vrot.slane %v492, 2
    %v494 = vmax.f32 %v492, %v493
    %v495 = vrot.slane %v494, 1
    %v496 = vmax.f32 %v494, %v495
    %v497 = vmax.f32 %v483, %v485
    %v498 = vrot.slane %v497, 4
    %v499 = vmax.f32 %v497, %v498
    %v500 = vrot.slane %v499, 2
    %v501 = vmax.f32 %v499, %v500
    %v502 = vrot.slane %v501, 1
    %v503 = vmax.f32 %v501, %v502
    %v504 = vmax.f32 %v486, %v488
    %v505 = vrot.slane %v504, 4
    %v506 = vmax.f32 %v504, %v505
    %v507 = vrot.slane %v506, 2
    %v508 = vmax.f32 %v506, %v507
    %v509 = vrot.slane %v508, 1
    %v510 = vmax.f32 %v508, %v509
    %v511 = vmax.f32 %v487, %v489
    %v512 = vrot.slane %v511, 4
    %v513 = vmax.f32 %v511, %v512
    %v514 = vrot.slane %v513, 2
    %v515 = vmax.f32 %v513, %v514
    %v516 = vrot.slane %v515, 1
    %v517 = vmax.f32 %v515, %v516
    %v522 = vrot.slane %v503, 6
    %v523 = vrot.slane %v517, 6
    %vm524 = vcmask 1041408
    %v525 = vsel %vm524, %v496, %v522
    %v526 = vsel %vm524, %v510, %v523
    %vm527 = vcmask 1044484
    %v528 = vsel %vm527, %v525, %v525
    %vm529 = vcmask 1046534
    %v530 = vsel %vm529, %v525, %v528
    %v531 = vrot.slane %v526, 7
    %vm532 = vcmask 1041409
    %v533 = vsel %vm532, %v531, %v530
    %vm534 = vcmask 1043459
    %v535 = vsel %vm534, %v531, %v533
    %vm536 = vcmask 1045509
    %v537 = vsel %vm536, %v531, %v535
    %vm538 = vcmask 1047559
    %v539 = vsel %vm538, %v531, %v537
    %541 = vst [vmem:[#allocation13] sm:$0xf] %v539
    // Predicated region
    $region62: #{tpu_custom_call.1} parent=1 // pred_check
      _
    $region63: #{tpu_custom_call.1} parent=1 // pred_check_branch
      %543 = sbr.rel (0) target = $region65
    $region64: #{tpu_custom_call.1} parent=1 // pred_region
      %545 = vsyncadd [#allocation4], 0
      %s547 = sshll.u32 [#allocation13], 4
      %s548 = int_to_ptr.vmem [resolvable:$true] %s547
      %s549 = sshll.u32 %s9, 4
      %s550 = int_to_ptr.hbm [resolvable:$true] %s549
      %552 = dma.vmem_to_hbm [thread:$0]  %s548, 64, %s550, [#allocation4]
    $region65: #{tpu_custom_call.1} parent=1 // pred_fallthru
      _
    // Predicated region
    $region66: #{tpu_custom_call.1} parent=1 // pred_check
      _
    $region67: #{tpu_custom_call.1} parent=1 // pred_check_branch
      %554 = sbr.rel (0) target = $region69
    $region68: #{tpu_custom_call.1} parent=1 // pred_region
      %556 = dma.done [#allocation4], 64
    $region69: #{tpu_custom_call.1} parent=1 // pred_fallthru
      _
    %557 = vsyncpa [#allocation3], 1
    %558 = vsyncpa [#allocation6], 1
    %559 = vsyncpa [#allocation9], 1
    %560 = vsyncpa [#allocation12], 1
    %561 = vsyncpa [#allocation4], 1

</llo_original>
